<compile_context>
chip_gen: v5e
topology: v5e:2x2
jax: 0.10.0
libtpu: 0.0.40
codegen_flags: <defaults>
</compile_context>

<pallas_src>
import numpy as np
import jax
import jax.numpy as jnp
from jax.experimental import pallas as pl
from jax.experimental.pallas import tpu as pltpu


def _make_sepconv_kernel(B, K, stride, pad, C_in, C_out, H1, W1, W1f, H2, W2):
    """Builds the fused SepConv kernel for static shape parameters."""
    W2f = W2  # stage 2 runs at stride 1, so its DW width equals the output width

    def kernel(x_ref, taps1_ref, m1_ref, sh1_ref,
               taps2_ref, m2_ref, sh2_ref, o_ref, mid_ref):
        # x_ref   : (B, Hp1, Wp1*C_in)  zero-padded, pre-ReLU, lane-packed (W,C)
        # taps*   : (K*K, Wf*C)         depthwise taps tiled along the packed W
        # m*      : block-diag 1x1-conv matrices (BN scale folded in)
        # sh*     : (1, W*C)            folded BatchNorm shift rows
        # o_ref   : (B, H2, W2*C_out)
        # mid_ref : (H1+2p, (W1+2p)*C_in) VMEM scratch: padded stage-1 output

        # Zero the scratch every grid step so the padding border is always 0
        # (safe under "parallel" megacore splitting; the interior is fully
        # rewritten for every sample below).
        mid_ref[...] = jnp.zeros_like(mid_ref)

        # Hoist the small constant tables out of the tap loops.
        taps1 = taps1_ref[...]
        taps2 = taps2_ref[...]
        sh1 = sh1_ref[...]
        sh2 = sh2_ref[...]

        for b in range(B):
            # ---- stage 1: ReLU -> DW KxK (stride) -> 1x1 * BN1.scale -> +shift
            acc = jnp.zeros((H1, W1f * C_in), jnp.float32)
            for kh in range(K):
                rows = (pl.ds(kh, H1) if stride == 1
                        else pl.ds(kh, H1, stride=stride))
                for kw in range(K):
                    win = jnp.maximum(                      # fused ReLU
                        x_ref[b, rows, pl.ds(kw * C_in, W1f * C_in)], 0.0)
                    tap = taps1[kh * K + kw: kh * K + kw + 1]   # (1, W1f*C_in)
                    acc = acc + win * tap
            mid = jnp.dot(acc, m1_ref[...],
                          preferred_element_type=jnp.float32) + sh1
            # Write into the interior of the zero-padded scratch.
            mid_ref[pl.ds(pad, H1), pl.ds(pad * C_in, W1 * C_in)] = mid

            # ---- stage 2: ReLU -> DW KxK (stride 1) -> 1x1 * BN2.scale -> +shift
            acc2 = jnp.zeros((H2, W2f * C_in), jnp.float32)
            for kh in range(K):
                for kw in range(K):
                    win = jnp.maximum(
                        mid_ref[pl.ds(kh, H2), pl.ds(kw * C_in, W2f * C_in)], 0.0)
                    tap = taps2[kh * K + kw: kh * K + kw + 1]
                    acc2 = acc2 + win * tap
            out = jnp.dot(acc2, m2_ref[...],
                          preferred_element_type=jnp.float32) + sh2
            o_ref[b] = out.astype(o_ref.dtype)

    return kernel


# TODO(synk): BatchNorm is folded with eval-mode running statistics; PyTorch's
# default training-mode batch statistics are not computed in-kernel.
def _fold_bn(gamma, beta, mean, var, eps=1e-5):
    scale = gamma / jnp.sqrt(var + eps)
    shift = beta - mean * scale
    return scale.astype(jnp.float32), shift.astype(jnp.float32)


def _padded_tile_bytes(rows, cols, itemsize=4):
    """Mosaic (8,128)-padded footprint of a 2-D f32 slab."""
    r = -(-rows // 8) * 8
    c = -(-cols // 128) * 128
    return r * c * itemsize


def _vmem_capacity_bytes():
    try:
        return int(pltpu.get_tpu_info().vmem_capacity_bytes)
    except Exception:
        return 64 * 1024 * 1024  # conservative (v7x-sized) fallback


def _pick_batch_block(n, per_sample_bytes, budget_bytes, max_b=8):
    """Largest divisor of n (<= max_b, bounding unrolled code size) whose
    double-buffered in/out slabs fit the budget, keeping >= 2 grid steps when
    n >= 2 so both TensorCores get work under dimension_semantics=parallel."""
    divisors = [b for b in range(1, min(n, max_b) + 1) if n % b == 0]
    best = 1
    for b in divisors:
        if 2 * b * per_sample_bytes <= budget_bytes:
            best = b
    if n >= 2:
        while best > 1 and n // best < 2:
            best = max(b for b in divisors if b < best)
    return best


def sep_conv(x, params, kernel_size, stride, padding):
    """SepConv forward.  x: (N, C_in, H, W) NCHW f32; params in PyTorch layout."""
    N, C_in, H, W = x.shape
    K, s, p = kernel_size, stride, padding
    C_out = params["w_pw2"].shape[0]

    Hp1, Wp1 = H + 2 * p, W + 2 * p
    H1, W1 = (Hp1 - K) // s + 1, (Wp1 - K) // s + 1   # stage-1 (strided) output
    W1f = Wp1 - K + 1                                  # stage-1 stride-1 DW width
    H2p, W2p = H1 + 2 * p, W1 + 2 * p                  # padded stage-2 input
    H2, W2 = H2p - K + 1, W2p - K + 1                  # final output
    W2f = W2

    # ---- fold BN scale into the pointwise weights; keep shift as a +row ----
    sc1, sh1 = _fold_bn(params["g1"], params["b1"], params["m1"], params["v1"])
    sc2, sh2 = _fold_bn(params["g2"], params["b2"], params["m2"], params["v2"])
    pw1 = (params["w_pw1"][:, :, 0, 0] * sc1[:, None]).T   # (C_in, C_in), col=c_out
    pw2 = (params["w_pw2"][:, :, 0, 0] * sc2[:, None]).T   # (C_in, C_out)

    # Block-diagonal pointwise matrices over the packed (W, C) lane axis; the
    # stage-1 matrix also performs the stride-s column subsample.
    sel1 = jnp.zeros((W1f, W1), jnp.float32).at[
        jnp.arange(W1) * s, jnp.arange(W1)].set(1.0)
    m1 = jnp.kron(sel1, pw1.astype(jnp.float32))            # (W1f*C_in, W1*C_in)
    m2 = jnp.kron(jnp.eye(W2, dtype=jnp.float32),
                  pw2.astype(jnp.float32))                   # (W2*C_in, W2*C_out)
    sh1_row = jnp.tile(sh1, W1)[None, :]                     # (1, W1*C_in)
    sh2_row = jnp.tile(sh2, W2)[None, :]                     # (1, W2*C_out)

    # Depthwise taps tiled along the packed W axis: lane j*C + c holds w[c,kh,kw].
    t1 = jnp.transpose(params["w_dw1"][:, 0], (1, 2, 0)).reshape(K * K, C_in)
    t2 = jnp.transpose(params["w_dw2"][:, 0], (1, 2, 0)).reshape(K * K, C_in)
    taps1 = jnp.tile(t1.astype(jnp.float32), (1, W1f))       # (K*K, W1f*C_in)
    taps2 = jnp.tile(t2.astype(jnp.float32), (1, W2f))       # (K*K, W2f*C_in)

    # ---- lane-packed, zero-padded input (pad before ReLU: ReLU(0)==0) ----
    x_nhwc = jnp.transpose(x, (0, 2, 3, 1))
    x_pad = jnp.pad(x_nhwc, ((0, 0), (p, p), (p, p), (0, 0)))
    x_packed = x_pad.reshape(N, Hp1, Wp1 * C_in)

    # ---- layout-aware + generation-aware VMEM budgeting ----
    per_sample = (_padded_tile_bytes(Hp1, Wp1 * C_in)
                  + _padded_tile_bytes(H2, W2 * C_out))
    weight_bytes = (_padded_tile_bytes(K * K, W1f * C_in)
                    + _padded_tile_bytes(W1f * C_in, W1 * C_in)
                    + _padded_tile_bytes(1, W1 * C_in)
                    + _padded_tile_bytes(K * K, W2f * C_in)
                    + _padded_tile_bytes(W2f * C_in, W2 * C_out)
                    + _padded_tile_bytes(1, W2 * C_out))
    scratch_bytes = _padded_tile_bytes(H2p, W2p * C_in)
    cap = _vmem_capacity_bytes()                  # 64 MiB v7x, 128 MiB v5e/v6e
    usable = int(0.75 * cap)                      # ~48 MiB v7x, ~96 MiB v5e/v6e
    block_budget = usable - 2 * weight_bytes - scratch_bytes - (4 << 20)
    B = _pick_batch_block(N, per_sample, max(block_budget, 2 * per_sample))
    need = 2 * B * per_sample + 2 * weight_bytes + scratch_bytes + (2 << 20)
    vmem_limit = int(min(cap - (8 << 20), max(usable, need)))
    vmem_limit = max(vmem_limit, 16 << 20)

    kernel = _make_sepconv_kernel(B, K, s, p, C_in, C_out, H1, W1, W1f, H2, W2)

    out = pl.pallas_call(
        kernel,
        out_shape=jax.ShapeDtypeStruct((N, H2, W2 * C_out), x.dtype),
        grid_spec=pltpu.PrefetchScalarGridSpec(
            num_scalar_prefetch=0,
            grid=(N // B,),
            in_specs=[
                pl.BlockSpec((B, Hp1, Wp1 * C_in), lambda n: (n, 0, 0)),
                pl.BlockSpec((K * K, W1f * C_in), lambda n: (0, 0)),
                pl.BlockSpec((W1f * C_in, W1 * C_in), lambda n: (0, 0)),
                pl.BlockSpec((1, W1 * C_in), lambda n: (0, 0)),
                pl.BlockSpec((K * K, W2f * C_in), lambda n: (0, 0)),
                pl.BlockSpec((W2f * C_in, W2 * C_out), lambda n: (0, 0)),
                pl.BlockSpec((1, W2 * C_out), lambda n: (0, 0)),
            ],
            out_specs=pl.BlockSpec((B, H2, W2 * C_out), lambda n: (n, 0, 0)),
            scratch_shapes=[pltpu.VMEM((H2p, W2p * C_in), jnp.float32)],
        ),
        compiler_params=pltpu.CompilerParams(
            dimension_semantics=("parallel",),
            vmem_limit_bytes=vmem_limit),
    )(x_packed, taps1, m1, sh1_row, taps2, m2, sh2_row)

    return jnp.transpose(out.reshape(N, H2, W2, C_out), (0, 3, 1, 2))


def sep_conv_reference(x, params, kernel_size, stride, padding, eps=1e-5):
    """Pure-JAX reference (XLA convs), eval-mode BN."""
    def stage(h, w_dw, w_pw, gamma, beta, mean, var, s):
        h = jnp.maximum(h, 0.0)
        d = jax.lax.conv_general_dilated(
            h, w_dw, window_strides=(s, s),
            padding=[(padding, padding), (padding, padding)],
            dimension_numbers=("NCHW", "OIHW", "NCHW"),
            feature_group_count=h.shape[1])
        y = jax.lax.conv_general_dilated(
            d, w_pw, window_strides=(1, 1), padding="VALID",
            dimension_numbers=("NCHW", "OIHW", "NCHW"))
        scale = gamma / jnp.sqrt(var + eps)
        shift = beta - mean * scale
        return y * scale[None, :, None, None] + shift[None, :, None, None]

    y = stage(x, params["w_dw1"], params["w_pw1"], params["g1"], params["b1"],
              params["m1"], params["v1"], stride)
    return stage(y, params["w_dw2"], params["w_pw2"], params["g2"],
                 params["b2"], params["m2"], params["v2"], 1)


if __name__ == "__main__":
    N, C_in, C_out, H, W = 2, 4, 8, 16, 16
    K, stride, padding = 3, 1, 1

    key = jax.random.PRNGKey(0)
    ks = jax.random.split(key, 13)

    def u(k, shape, fan_in):
        b = 1.0 / np.sqrt(fan_in)
        return jax.random.uniform(k, shape, jnp.float32, -b, b)

    params = {
        # PyTorch layouts: depthwise (C,1,K,K); pointwise (C_out,C_in,1,1).
        "w_dw1": u(ks[0], (C_in, 1, K, K), K * K),
        "w_pw1": u(ks[1], (C_in, C_in, 1, 1), C_in),
        "g1": jax.random.uniform(ks[2], (C_in,), jnp.float32, 0.5, 1.5),
        "b1": jax.random.normal(ks[3], (C_in,), jnp.float32) * 0.1,
        "m1": jax.random.normal(ks[4], (C_in,), jnp.float32) * 0.1,
        "v1": jax.random.uniform(ks[5], (C_in,), jnp.float32, 0.5, 1.5),
        "w_dw2": u(ks[6], (C_in, 1, K, K), K * K),
        "w_pw2": u(ks[7], (C_out, C_in, 1, 1), C_in),
        "g2": jax.random.uniform(ks[8], (C_out,), jnp.float32, 0.5, 1.5),
        "b2": jax.random.normal(ks[9], (C_out,), jnp.float32) * 0.1,
        "m2": jax.random.normal(ks[10], (C_out,), jnp.float32) * 0.1,
        "v2": jax.random.uniform(ks[11], (C_out,), jnp.float32, 0.5, 1.5),
    }
    x = jax.random.normal(ks[12], (N, C_in, H, W), dtype=jnp.float32)

    out = jax.block_until_ready(sep_conv(x, params, K, stride, padding))
    ref = sep_conv_reference(x, params, K, stride, padding)
    np.testing.assert_allclose(np.asarray(out), np.asarray(ref),
                               rtol=2e-4, atol=2e-4)
    print("KERNEL_OK")
</pallas_src>

<mosaic_0001>
module attributes {stable_mosaic.version = 11 : i64} {
  func.func @kernel(%arg0: i32, %arg1: memref<1x18x72xf32, #tpu.memory_space<vmem>>, %arg2: memref<9x64xf32, #tpu.memory_space<vmem>>, %arg3: memref<64x64xf32, #tpu.memory_space<vmem>>, %arg4: memref<1x64xf32, #tpu.memory_space<vmem>>, %arg5: memref<9x64xf32, #tpu.memory_space<vmem>>, %arg6: memref<64x128xf32, #tpu.memory_space<vmem>>, %arg7: memref<1x128xf32, #tpu.memory_space<vmem>>, %arg8: memref<1x16x128xf32, #tpu.memory_space<vmem>>, %arg9: memref<18x72xf32, #tpu.memory_space<vmem>>) attributes {dimension_semantics = [#tpu.dimension_semantics<parallel>], iteration_bounds = array<i64: 2>, scalar_prefetch = 0 : i64, scratch_operands = 1 : i64, tpu.core_type = #tpu.core_type<tc>, window_params = [{transform_indices = @transform_0, window_bounds = array<i64: 1, 18, 72>}, {pipeline_mode = #tpu.pipeline_mode<synchronous>, transform_indices = @transform_1, window_bounds = array<i64: 9, 64>}, {pipeline_mode = #tpu.pipeline_mode<synchronous>, transform_indices = @transform_2, window_bounds = array<i64: 64, 64>}, {pipeline_mode = #tpu.pipeline_mode<synchronous>, transform_indices = @transform_3, window_bounds = array<i64: 1, 64>}, {pipeline_mode = #tpu.pipeline_mode<synchronous>, transform_indices = @transform_4, window_bounds = array<i64: 9, 64>}, {pipeline_mode = #tpu.pipeline_mode<synchronous>, transform_indices = @transform_5, window_bounds = array<i64: 64, 128>}, {pipeline_mode = #tpu.pipeline_mode<synchronous>, transform_indices = @transform_6, window_bounds = array<i64: 1, 128>}, {transform_indices = @transform_7, window_bounds = array<i64: 1, 16, 128>}]} {
    %cst = arith.constant 0.000000e+00 : f32
    %0 = vector.broadcast %cst : f32 to vector<18x72xf32>
    %c0 = arith.constant 0 : index
    %c0_0 = arith.constant 0 : index
    %1 = vector.load %arg9[%c0, %c0_0] : memref<18x72xf32, #tpu.memory_space<vmem>>, vector<18x72xf32>
    tpu.vector_store %arg9[%c0, %c0_0], %0 {strides = array<i32>} : memref<18x72xf32, #tpu.memory_space<vmem>>, vector<18x72xf32>,
    %c0_1 = arith.constant 0 : index
    %c0_2 = arith.constant 0 : index
    %2 = vector.load %arg2[%c0_1, %c0_2] : memref<9x64xf32, #tpu.memory_space<vmem>>, vector<9x64xf32>
    %c0_3 = arith.constant 0 : index
    %c0_4 = arith.constant 0 : index
    %3 = vector.load %arg5[%c0_3, %c0_4] : memref<9x64xf32, #tpu.memory_space<vmem>>, vector<9x64xf32>
    %c0_5 = arith.constant 0 : index
    %c0_6 = arith.constant 0 : index
    %4 = vector.load %arg4[%c0_5, %c0_6] : memref<1x64xf32, #tpu.memory_space<vmem>>, vector<1x64xf32>
    %c0_7 = arith.constant 0 : index
    %c0_8 = arith.constant 0 : index
    %5 = vector.load %arg7[%c0_7, %c0_8] : memref<1x128xf32, #tpu.memory_space<vmem>>, vector<1x128xf32>
    %cst_9 = arith.constant 0.000000e+00 : f32
    %6 = vector.broadcast %cst_9 : f32 to vector<16x64xf32>
    %c0_10 = arith.constant 0 : index
    %c0_11 = arith.constant 0 : index
    %c0_12 = arith.constant 0 : index
    %7 = vector.load %arg1[%c0_10, %c0_11, %c0_12] : memref<1x18x72xf32, #tpu.memory_space<vmem>>, vector<1x16x64xf32>
    %8 = vector.shape_cast %7 : vector<1x16x64xf32> to vector<16x64xf32>
    %cst_13 = arith.constant 0.000000e+00 : f32
    %9 = vector.broadcast %cst_13 : f32 to vector<16x64xf32>
    %10 = arith.maximumf %8, %9 : vector<16x64xf32>
    %11 = vector.extract_strided_slice %2 {offsets = [0, 0], sizes = [1, 64], strides = [1, 1]} : vector<9x64xf32> to vector<1x64xf32>
    %12 = vector.broadcast %11 : vector<1x64xf32> to vector<16x64xf32>
    %13 = arith.mulf %10, %12 : vector<16x64xf32>
    %14 = arith.addf %6, %13 : vector<16x64xf32>
    %c0_14 = arith.constant 0 : index
    %c0_15 = arith.constant 0 : index
    %c4 = arith.constant 4 : index
    %15 = vector.load %arg1[%c0_14, %c0_15, %c4] : memref<1x18x72xf32, #tpu.memory_space<vmem>>, vector<1x16x64xf32>
    %16 = vector.shape_cast %15 : vector<1x16x64xf32> to vector<16x64xf32>
    %cst_16 = arith.constant 0.000000e+00 : f32
    %17 = vector.broadcast %cst_16 : f32 to vector<16x64xf32>
    %18 = arith.maximumf %16, %17 : vector<16x64xf32>
    %19 = vector.extract_strided_slice %2 {offsets = [1, 0], sizes = [1, 64], strides = [1, 1]} : vector<9x64xf32> to vector<1x64xf32>
    %20 = vector.broadcast %19 : vector<1x64xf32> to vector<16x64xf32>
    %21 = arith.mulf %18, %20 : vector<16x64xf32>
    %22 = arith.addf %14, %21 : vector<16x64xf32>
    %c0_17 = arith.constant 0 : index
    %c0_18 = arith.constant 0 : index
    %c8 = arith.constant 8 : index
    %23 = vector.load %arg1[%c0_17, %c0_18, %c8] : memref<1x18x72xf32, #tpu.memory_space<vmem>>, vector<1x16x64xf32>
    %24 = vector.shape_cast %23 : vector<1x16x64xf32> to vector<16x64xf32>
    %cst_19 = arith.constant 0.000000e+00 : f32
    %25 = vector.broadcast %cst_19 : f32 to vector<16x64xf32>
    %26 = arith.maximumf %24, %25 : vector<16x64xf32>
    %27 = vector.extract_strided_slice %2 {offsets = [2, 0], sizes = [1, 64], strides = [1, 1]} : vector<9x64xf32> to vector<1x64xf32>
    %28 = vector.broadcast %27 : vector<1x64xf32> to vector<16x64xf32>
    %29 = arith.mulf %26, %28 : vector<16x64xf32>
    %30 = arith.addf %22, %29 : vector<16x64xf32>
    %c0_20 = arith.constant 0 : index
    %c1 = arith.constant 1 : index
    %c0_21 = arith.constant 0 : index
    %31 = vector.load %arg1[%c0_20, %c1, %c0_21] : memref<1x18x72xf32, #tpu.memory_space<vmem>>, vector<1x16x64xf32>
    %32 = vector.shape_cast %31 : vector<1x16x64xf32> to vector<16x64xf32>
    %cst_22 = arith.constant 0.000000e+00 : f32
    %33 = vector.broadcast %cst_22 : f32 to vector<16x64xf32>
    %34 = arith.maximumf %32, %33 : vector<16x64xf32>
    %35 = vector.extract_strided_slice %2 {offsets = [3, 0], sizes = [1, 64], strides = [1, 1]} : vector<9x64xf32> to vector<1x64xf32>
    %36 = vector.broadcast %35 : vector<1x64xf32> to vector<16x64xf32>
    %37 = arith.mulf %34, %36 : vector<16x64xf32>
    %38 = arith.addf %30, %37 : vector<16x64xf32>
    %c0_23 = arith.constant 0 : index
    %c1_24 = arith.constant 1 : index
    %c4_25 = arith.constant 4 : index
    %39 = vector.load %arg1[%c0_23, %c1_24, %c4_25] : memref<1x18x72xf32, #tpu.memory_space<vmem>>, vector<1x16x64xf32>
    %40 = vector.shape_cast %39 : vector<1x16x64xf32> to vector<16x64xf32>
    %cst_26 = arith.constant 0.000000e+00 : f32
    %41 = vector.broadcast %cst_26 : f32 to vector<16x64xf32>
    %42 = arith.maximumf %40, %41 : vector<16x64xf32>
    %43 = vector.extract_strided_slice %2 {offsets = [4, 0], sizes = [1, 64], strides = [1, 1]} : vector<9x64xf32> to vector<1x64xf32>
    %44 = vector.broadcast %43 : vector<1x64xf32> to vector<16x64xf32>
    %45 = arith.mulf %42, %44 : vector<16x64xf32>
    %46 = arith.addf %38, %45 : vector<16x64xf32>
    %c0_27 = arith.constant 0 : index
    %c1_28 = arith.constant 1 : index
    %c8_29 = arith.constant 8 : index
    %47 = vector.load %arg1[%c0_27, %c1_28, %c8_29] : memref<1x18x72xf32, #tpu.memory_space<vmem>>, vector<1x16x64xf32>
    %48 = vector.shape_cast %47 : vector<1x16x64xf32> to vector<16x64xf32>
    %cst_30 = arith.constant 0.000000e+00 : f32
    %49 = vector.broadcast %cst_30 : f32 to vector<16x64xf32>
    %50 = arith.maximumf %48, %49 : vector<16x64xf32>
    %51 = vector.extract_strided_slice %2 {offsets = [5, 0], sizes = [1, 64], strides = [1, 1]} : vector<9x64xf32> to vector<1x64xf32>
    %52 = vector.broadcast %51 : vector<1x64xf32> to vector<16x64xf32>
    %53 = arith.mulf %50, %52 : vector<16x64xf32>
    %54 = arith.addf %46, %53 : vector<16x64xf32>
    %c0_31 = arith.constant 0 : index
    %c2 = arith.constant 2 : index
    %c0_32 = arith.constant 0 : index
    %55 = vector.load %arg1[%c0_31, %c2, %c0_32] : memref<1x18x72xf32, #tpu.memory_space<vmem>>, vector<1x16x64xf32>
    %56 = vector.shape_cast %55 : vector<1x16x64xf32> to vector<16x64xf32>
    %cst_33 = arith.constant 0.000000e+00 : f32
    %57 = vector.broadcast %cst_33 : f32 to vector<16x64xf32>
    %58 = arith.maximumf %56, %57 : vector<16x64xf32>
    %59 = vector.extract_strided_slice %2 {offsets = [6, 0], sizes = [1, 64], strides = [1, 1]} : vector<9x64xf32> to vector<1x64xf32>
    %60 = vector.broadcast %59 : vector<1x64xf32> to vector<16x64xf32>
    %61 = arith.mulf %58, %60 : vector<16x64xf32>
    %62 = arith.addf %54, %61 : vector<16x64xf32>
    %c0_34 = arith.constant 0 : index
    %c2_35 = arith.constant 2 : index
    %c4_36 = arith.constant 4 : index
    %63 = vector.load %arg1[%c0_34, %c2_35, %c4_36] : memref<1x18x72xf32, #tpu.memory_space<vmem>>, vector<1x16x64xf32>
    %64 = vector.shape_cast %63 : vector<1x16x64xf32> to vector<16x64xf32>
    %cst_37 = arith.constant 0.000000e+00 : f32
    %65 = vector.broadcast %cst_37 : f32 to vector<16x64xf32>
    %66 = arith.maximumf %64, %65 : vector<16x64xf32>
    %67 = vector.extract_strided_slice %2 {offsets = [7, 0], sizes = [1, 64], strides = [1, 1]} : vector<9x64xf32> to vector<1x64xf32>
    %68 = vector.broadcast %67 : vector<1x64xf32> to vector<16x64xf32>
    %69 = arith.mulf %66, %68 : vector<16x64xf32>
    %70 = arith.addf %62, %69 : vector<16x64xf32>
    %c0_38 = arith.constant 0 : index
    %c2_39 = arith.constant 2 : index
    %c8_40 = arith.constant 8 : index
    %71 = vector.load %arg1[%c0_38, %c2_39, %c8_40] : memref<1x18x72xf32, #tpu.memory_space<vmem>>, vector<1x16x64xf32>
    %72 = vector.shape_cast %71 : vector<1x16x64xf32> to vector<16x64xf32>
    %cst_41 = arith.constant 0.000000e+00 : f32
    %73 = vector.broadcast %cst_41 : f32 to vector<16x64xf32>
    %74 = arith.maximumf %72, %73 : vector<16x64xf32>
    %75 = vector.extract_strided_slice %2 {offsets = [8, 0], sizes = [1, 64], strides = [1, 1]} : vector<9x64xf32> to vector<1x64xf32>
    %76 = vector.broadcast %75 : vector<1x64xf32> to vector<16x64xf32>
    %77 = arith.mulf %74, %76 : vector<16x64xf32>
    %78 = arith.addf %70, %77 : vector<16x64xf32>
    %c0_42 = arith.constant 0 : index
    %c0_43 = arith.constant 0 : index
    %79 = vector.load %arg3[%c0_42, %c0_43] : memref<64x64xf32, #tpu.memory_space<vmem>>, vector<64x64xf32>
    %cst_44 = arith.constant dense<0.000000e+00> : vector<16x64xf32>
    %80 = tpu.matmul %78, %79, %cst_44 {dimension_numbers = #tpu.dot_dimension_numbers<[1], [0], [0], [1], [0, 0, 1, 1], [], []>} : vector<16x64xf32>, vector<64x64xf32>, vector<16x64xf32> -> vector<16x64xf32>
    %81 = vector.broadcast %4 : vector<1x64xf32> to vector<16x64xf32>
    %82 = arith.addf %80, %81 : vector<16x64xf32>
    %c1_45 = arith.constant 1 : index
    %c4_46 = arith.constant 4 : index
    %83 = vector.load %arg9[%c1_45, %c4_46] : memref<18x72xf32, #tpu.memory_space<vmem>>, vector<16x64xf32>
    tpu.vector_store %arg9[%c1_45, %c4_46], %82 {strides = array<i32>} : memref<18x72xf32, #tpu.memory_space<vmem>>, vector<16x64xf32>,
    %cst_47 = arith.constant 0.000000e+00 : f32
    %84 = vector.broadcast %cst_47 : f32 to vector<16x64xf32>
    %c0_48 = arith.constant 0 : index
    %c0_49 = arith.constant 0 : index
    %85 = vector.load %arg9[%c0_48, %c0_49] : memref<18x72xf32, #tpu.memory_space<vmem>>, vector<16x64xf32>
    %cst_50 = arith.constant 0.000000e+00 : f32
    %86 = vector.broadcast %cst_50 : f32 to vector<16x64xf32>
    %87 = arith.maximumf %85, %86 : vector<16x64xf32>
    %88 = vector.extract_strided_slice %3 {offsets = [0, 0], sizes = [1, 64], strides = [1, 1]} : vector<9x64xf32> to vector<1x64xf32>
    %89 = vector.broadcast %88 : vector<1x64xf32> to vector<16x64xf32>
    %90 = arith.mulf %87, %89 : vector<16x64xf32>
    %91 = arith.addf %84, %90 : vector<16x64xf32>
    %c0_51 = arith.constant 0 : index
    %c4_52 = arith.constant 4 : index
    %92 = vector.load %arg9[%c0_51, %c4_52] : memref<18x72xf32, #tpu.memory_space<vmem>>, vector<16x64xf32>
    %cst_53 = arith.constant 0.000000e+00 : f32
    %93 = vector.broadcast %cst_53 : f32 to vector<16x64xf32>
    %94 = arith.maximumf %92, %93 : vector<16x64xf32>
    %95 = vector.extract_strided_slice %3 {offsets = [1, 0], sizes = [1, 64], strides = [1, 1]} : vector<9x64xf32> to vector<1x64xf32>
    %96 = vector.broadcast %95 : vector<1x64xf32> to vector<16x64xf32>
    %97 = arith.mulf %94, %96 : vector<16x64xf32>
    %98 = arith.addf %91, %97 : vector<16x64xf32>
    %c0_54 = arith.constant 0 : index
    %c8_55 = arith.constant 8 : index
    %99 = vector.load %arg9[%c0_54, %c8_55] : memref<18x72xf32, #tpu.memory_space<vmem>>, vector<16x64xf32>
    %cst_56 = arith.constant 0.000000e+00 : f32
    %100 = vector.broadcast %cst_56 : f32 to vector<16x64xf32>
    %101 = arith.maximumf %99, %100 : vector<16x64xf32>
    %102 = vector.extract_strided_slice %3 {offsets = [2, 0], sizes = [1, 64], strides = [1, 1]} : vector<9x64xf32> to vector<1x64xf32>
    %103 = vector.broadcast %102 : vector<1x64xf32> to vector<16x64xf32>
    %104 = arith.mulf %101, %103 : vector<16x64xf32>
    %105 = arith.addf %98, %104 : vector<16x64xf32>
    %c1_57 = arith.constant 1 : index
    %c0_58 = arith.constant 0 : index
    %106 = vector.load %arg9[%c1_57, %c0_58] : memref<18x72xf32, #tpu.memory_space<vmem>>, vector<16x64xf32>
    %cst_59 = arith.constant 0.000000e+00 : f32
    %107 = vector.broadcast %cst_59 : f32 to vector<16x64xf32>
    %108 = arith.maximumf %106, %107 : vector<16x64xf32>
    %109 = vector.extract_strided_slice %3 {offsets = [3, 0], sizes = [1, 64], strides = [1, 1]} : vector<9x64xf32> to vector<1x64xf32>
    %110 = vector.broadcast %109 : vector<1x64xf32> to vector<16x64xf32>
    %111 = arith.mulf %108, %110 : vector<16x64xf32>
    %112 = arith.addf %105, %111 : vector<16x64xf32>
    %c1_60 = arith.constant 1 : index
    %c4_61 = arith.constant 4 : index
    %113 = vector.load %arg9[%c1_60, %c4_61] : memref<18x72xf32, #tpu.memory_space<vmem>>, vector<16x64xf32>
    %cst_62 = arith.constant 0.000000e+00 : f32
    %114 = vector.broadcast %cst_62 : f32 to vector<16x64xf32>
    %115 = arith.maximumf %113, %114 : vector<16x64xf32>
    %116 = vector.extract_strided_slice %3 {offsets = [4, 0], sizes = [1, 64], strides = [1, 1]} : vector<9x64xf32> to vector<1x64xf32>
    %117 = vector.broadcast %116 : vector<1x64xf32> to vector<16x64xf32>
    %118 = arith.mulf %115, %117 : vector<16x64xf32>
    %119 = arith.addf %112, %118 : vector<16x64xf32>
    %c1_63 = arith.constant 1 : index
    %c8_64 = arith.constant 8 : index
    %120 = vector.load %arg9[%c1_63, %c8_64] : memref<18x72xf32, #tpu.memory_space<vmem>>, vector<16x64xf32>
    %cst_65 = arith.constant 0.000000e+00 : f32
    %121 = vector.broadcast %cst_65 : f32 to vector<16x64xf32>
    %122 = arith.maximumf %120, %121 : vector<16x64xf32>
    %123 = vector.extract_strided_slice %3 {offsets = [5, 0], sizes = [1, 64], strides = [1, 1]} : vector<9x64xf32> to vector<1x64xf32>
    %124 = vector.broadcast %123 : vector<1x64xf32> to vector<16x64xf32>
    %125 = arith.mulf %122, %124 : vector<16x64xf32>
    %126 = arith.addf %119, %125 : vector<16x64xf32>
    %c2_66 = arith.constant 2 : index
    %c0_67 = arith.constant 0 : index
    %127 = vector.load %arg9[%c2_66, %c0_67] : memref<18x72xf32, #tpu.memory_space<vmem>>, vector<16x64xf32>
    %cst_68 = arith.constant 0.000000e+00 : f32
    %128 = vector.broadcast %cst_68 : f32 to vector<16x64xf32>
    %129 = arith.maximumf %127, %128 : vector<16x64xf32>
    %130 = vector.extract_strided_slice %3 {offsets = [6, 0], sizes = [1, 64], strides = [1, 1]} : vector<9x64xf32> to vector<1x64xf32>
    %131 = vector.broadcast %130 : vector<1x64xf32> to vector<16x64xf32>
    %132 = arith.mulf %129, %131 : vector<16x64xf32>
    %133 = arith.addf %126, %132 : vector<16x64xf32>
    %c2_69 = arith.constant 2 : index
    %c4_70 = arith.constant 4 : index
    %134 = vector.load %arg9[%c2_69, %c4_70] : memref<18x72xf32, #tpu.memory_space<vmem>>, vector<16x64xf32>
    %cst_71 = arith.constant 0.000000e+00 : f32
    %135 = vector.broadcast %cst_71 : f32 to vector<16x64xf32>
    %136 = arith.maximumf %134, %135 : vector<16x64xf32>
    %137 = vector.extract_strided_slice %3 {offsets = [7, 0], sizes = [1, 64], strides = [1, 1]} : vector<9x64xf32> to vector<1x64xf32>
    %138 = vector.broadcast %137 : vector<1x64xf32> to vector<16x64xf32>
    %139 = arith.mulf %136, %138 : vector<16x64xf32>
    %140 = arith.addf %133, %139 : vector<16x64xf32>
    %c2_72 = arith.constant 2 : index
    %c8_73 = arith.constant 8 : index
    %141 = vector.load %arg9[%c2_72, %c8_73] : memref<18x72xf32, #tpu.memory_space<vmem>>, vector<16x64xf32>
    %cst_74 = arith.constant 0.000000e+00 : f32
    %142 = vector.broadcast %cst_74 : f32 to vector<16x64xf32>
    %143 = arith.maximumf %141, %142 : vector<16x64xf32>
    %144 = vector.extract_strided_slice %3 {offsets = [8, 0], sizes = [1, 64], strides = [1, 1]} : vector<9x64xf32> to vector<1x64xf32>
    %145 = vector.broadcast %144 : vector<1x64xf32> to vector<16x64xf32>
    %146 = arith.mulf %143, %145 : vector<16x64xf32>
    %147 = arith.addf %140, %146 : vector<16x64xf32>
    %c0_75 = arith.constant 0 : index
    %c0_76 = arith.constant 0 : index
    %148 = vector.load %arg6[%c0_75, %c0_76] : memref<64x128xf32, #tpu.memory_space<vmem>>, vector<64x128xf32>
    %cst_77 = arith.constant dense<0.000000e+00> : vector<16x128xf32>
    %149 = tpu.matmul %147, %148, %cst_77 {dimension_numbers = #tpu.dot_dimension_numbers<[1], [0], [0], [1], [0, 0, 1, 1], [], []>} : vector<16x64xf32>, vector<64x128xf32>, vector<16x128xf32> -> vector<16x128xf32>
    %150 = vector.broadcast %5 : vector<1x128xf32> to vector<16x128xf32>
    %151 = arith.addf %149, %150 : vector<16x128xf32>
    %c0_78 = arith.constant 0 : index
    %c0_79 = arith.constant 0 : index
    %c0_80 = arith.constant 0 : index
    %152 = vector.load %arg8[%c0_78, %c0_79, %c0_80] : memref<1x16x128xf32, #tpu.memory_space<vmem>>, vector<1x16x128xf32>
    %153 = vector.shape_cast %152 : vector<1x16x128xf32> to vector<16x128xf32>
    %154 = vector.shape_cast %151 : vector<16x128xf32> to vector<1x16x128xf32>
    tpu.vector_store %arg8[%c0_78, %c0_79, %c0_80], %154 {strides = array<i32>} : memref<1x16x128xf32, #tpu.memory_space<vmem>>, vector<1x16x128xf32>,
    return
  }
  func.func @transform_0(%arg0: i32) -> (i32, i32, i32) {
    %c0_i32 = arith.constant 0 : i32
    %c0_i32_0 = arith.constant 0 : i32
    %c0_i32_1 = arith.constant 0 : i32
    return %arg0, %c0_i32, %c0_i32_0 : i32, i32, i32
  }
  func.func @transform_1(%arg0: i32) -> (i32, i32) {
    %c0_i32 = arith.constant 0 : i32
    %c0_i32_0 = arith.constant 0 : i32
    %c0_i32_1 = arith.constant 0 : i32
    return %c0_i32, %c0_i32_0 : i32, i32
  }
  func.func @transform_2(%arg0: i32) -> (i32, i32) {
    %c0_i32 = arith.constant 0 : i32
    %c0_i32_0 = arith.constant 0 : i32
    %c0_i32_1 = arith.constant 0 : i32
    return %c0_i32, %c0_i32_0 : i32, i32
  }
  func.func @transform_3(%arg0: i32) -> (i32, i32) {
    %c0_i32 = arith.constant 0 : i32
    %c0_i32_0 = arith.constant 0 : i32
    %c0_i32_1 = arith.constant 0 : i32
    return %c0_i32, %c0_i32_0 : i32, i32
  }
  func.func @transform_4(%arg0: i32) -> (i32, i32) {
    %c0_i32 = arith.constant 0 : i32
    %c0_i32_0 = arith.constant 0 : i32
    %c0_i32_1 = arith.constant 0 : i32
    return %c0_i32, %c0_i32_0 : i32, i32
  }
  func.func @transform_5(%arg0: i32) -> (i32, i32) {
    %c0_i32 = arith.constant 0 : i32
    %c0_i32_0 = arith.constant 0 : i32
    %c0_i32_1 = arith.constant 0 : i32
    return %c0_i32, %c0_i32_0 : i32, i32
  }
  func.func @transform_6(%arg0: i32) -> (i32, i32) {
    %c0_i32 = arith.constant 0 : i32
    %c0_i32_0 = arith.constant 0 : i32
    %c0_i32_1 = arith.constant 0 : i32
    return %c0_i32, %c0_i32_0 : i32, i32
  }
  func.func @transform_7(%arg0: i32) -> (i32, i32, i32) {
    %c0_i32 = arith.constant 0 : i32
    %c0_i32_0 = arith.constant 0 : i32
    %c0_i32_1 = arith.constant 0 : i32
    return %arg0, %c0_i32, %c0_i32_0 : i32, i32, i32
  }
}

</mosaic_0001>

<llo_original>
// kernel: tpu_custom_call.1
$region0: #{tpu_custom_call.1}
  #allocation0 [shape = 'u32[]', space=smem, size = 0x4, offset = 0x4, fixed_abs, tag = 'smem constant byte address 0x4 - core index']
  #allocation1 [shape = 'u32[72,128]{1,0:T(1,128)}', space=vmem, size = 0x9000, scoped, tag = 'internal scratch']
  #allocation2 [shape = 'f32[18,72]{1,0:T(8,128)}', space=vmem, size = 0x3000, scoped, tag = 'scratch operand']
  %s0 = inlined_call_operand.vmem [shape: f32[2,18,72], index: 0, kind: input, shape index: {}]
  %s1 = inlined_call_operand.vmem [shape: f32[9,64], index: 1, kind: input, shape index: {}]
  %s2 = inlined_call_operand.vmem [shape: f32[64,64], index: 2, kind: input, shape index: {}]
  %s3 = inlined_call_operand.vmem [shape: f32[1,64], index: 3, kind: input, shape index: {}]
  %s4 = inlined_call_operand.hbm [shape: f32[9,64], index: 4, kind: input, shape index: {}]
  %s5 = inlined_call_operand.hbm [shape: f32[64,128], index: 5, kind: input, shape index: {}]
  %s6 = inlined_call_operand.vmem [shape: f32[1,128], index: 6, kind: input, shape index: {}]
  %s7 = inlined_call_operand.hbm [shape: f32[2,16,128], index: 7, kind: output, shape index: {}]
  %s8 = sld [smem:[#allocation0]]
  $region69: #{tpu_custom_call.1} parent=0
    _
  %s10 = ssub.s32 1, %s8
  %s11 = scalar_select 0, %s10, %s8
  $region1: #{tpu_custom_call.1} parent=0
    #allocation3 [shape = 'u8[8192]{0}', space=vmem, size = 0x2000, scoped, tag = 'input window, operand 4, single buffered']
    #allocation4 [shape = 's32[2]{0}', space=sflag, size = 0x8, scoped, tag = 'scoped memory for tpu_custom_call.1']
    #allocation5 [shape = 's32[2]{0}', space=sflag, size = 0x8, scoped, tag = 'scoped memory for tpu_custom_call.1']
    #allocation6 [shape = 'u8[32768]{0}', space=vmem, size = 0x8000, scoped, tag = 'input window, operand 5, single buffered']
    #allocation7 [shape = 's32[1]{0}', space=sflag, size = 0x4, scoped, tag = 'scoped memory for tpu_custom_call.1']
    #allocation8 [shape = 'u8[16384]{0}', space=vmem, size = 0x4000, scoped, tag = 'output window, operand 0']
    %12 = vsyncpa [#allocation4], 0
    %13 = vsyncpa [#allocation7], 0
    %14 = vsyncpa [#allocation5], 0
    %s15 = scalar_lea.sflag [#allocation5], 1
    %16 = vsyncpa %s15, 0
    loop: start=0, step=1, limit=4
    $region2: #{tpu_custom_call.1} parent=1 // loop_pre_header
      _
    $region3: #{tpu_custom_call.1} parent=1 // loop_header
      %s18 = sphi 0, %s22
      %p19 = scmp.ge.s32.totalorder %s18, 4
      %s28 = sphi 0, %s30
      %s31 = sphi 0, %s28
      %s32 = sphi 0, %s31
      %s48 = sphi 0, %s32
      %s52 = sphi 0, %s52
      %s54 = sphi 0, %s52
      %s55 = sphi 0, %s54
      %s69 = sphi 0, %s55
      %s73 = sphi 0, %s73
      %s75 = sphi 0, %s73
      %s76 = sphi 0, %s75
      %s90 = sphi 0, %s76
      %s94 = sphi 0, %s94
      %s96 = sphi 0, %s94
      %s97 = sphi 0, %s96
      %s111 = sphi 0, %s97
      %s115 = sphi 0, %s115
      %s117 = sphi 0, %s115
      %s118 = sphi 0, %s117
      %s132 = sphi 0, %s118
      %s136 = sphi 0, %s136
      %s138 = sphi 0, %s136
      %s139 = sphi 0, %s138
      %s153 = sphi 0, %s139
      %s157 = sphi 0, %s157
      %s159 = sphi 0, %s157
      %s160 = sphi 0, %s159
      %s174 = sphi 0, %s160
      %s180 = sphi 0, %s182
      %s183 = sphi 0, %s180
      %s184 = sphi 0, %s183
      %s200 = sphi 0, %s184
    $region4: #{tpu_custom_call.1} parent=1 // loop_header_branch
      %21 = sbr.rel (%p19) target = $region8
    $region5: #{tpu_custom_call.1} parent=1 // loop_body
      %s23 = ssub.s32 %s18, 1
      %s24 = ssub.s32 %s18, 2
      %s25 = sadd.s32 %s18, 1
      %s26 = ssub.s32 %s18, %s25
      %p27 = scmp.eq.s32.totalorder %s26, 0
      %s29 = sadd.s32 %s28, 1
      %s30 = scalar_select %p27, %s28, %s29
      %p33 = pneg %p27
      %p34 = scmp.eq.s32.totalorder %s18, 1
      %p35 = por %p33, %p34
      %p36 = scmp.ne.s32.totalorder %s28, %s31
      %p37 = scmp.eq.s32.totalorder %s18, 0
      %p38 = por %p36, %p37
      %p39 = scmp.ne.s32.totalorder %s28, %s31
      %p40 = scmp.eq.s32.totalorder %s23, 1
      %p41 = por %p39, %p40
      %p42 = scmp.ne.s32.totalorder %s31, %s32
      %p43 = scmp.eq.s32.totalorder %s23, 0
      %p44 = por %p42, %p43
      %p45 = scmp.ne.s32.totalorder %s31, %s32
      %p46 = scmp.eq.s32.totalorder %s24, 1
      %p47 = por %p45, %p46
      %p49 = scmp.ne.s32.totalorder %s32, %s48
      %p50 = scmp.eq.s32.totalorder %s24, 0
      %p51 = por %p49, %p50
      %s53 = sadd.s32 %s52, 1
      %p56 = scmp.eq.s32.totalorder %s18, 1
      %p57 = scmp.ne.s32.totalorder %s52, %s54
      %p58 = scmp.eq.s32.totalorder %s18, 0
      %p59 = por %p57, %p58
      %p60 = scmp.ne.s32.totalorder %s52, %s54
      %p61 = scmp.eq.s32.totalorder %s23, 1
      %p62 = por %p60, %p61
      %p63 = scmp.ne.s32.totalorder %s54, %s55
      %p64 = scmp.eq.s32.totalorder %s23, 0
      %p65 = por %p63, %p64
      %p66 = scmp.ne.s32.totalorder %s54, %s55
      %p67 = scmp.eq.s32.totalorder %s24, 1
      %p68 = por %p66, %p67
      %p70 = scmp.ne.s32.totalorder %s55, %s69
      %p71 = scmp.eq.s32.totalorder %s24, 0
      %p72 = por %p70, %p71
      %s74 = sadd.s32 %s73, 1
      %p77 = scmp.eq.s32.totalorder %s18, 1
      %p78 = scmp.ne.s32.totalorder %s73, %s75
      %p79 = scmp.eq.s32.totalorder %s18, 0
      %p80 = por %p78, %p79
      %p81 = scmp.ne.s32.totalorder %s73, %s75
      %p82 = scmp.eq.s32.totalorder %s23, 1
      %p83 = por %p81, %p82
      %p84 = scmp.ne.s32.totalorder %s75, %s76
      %p85 = scmp.eq.s32.totalorder %s23, 0
      %p86 = por %p84, %p85
      %p87 = scmp.ne.s32.totalorder %s75, %s76
      %p88 = scmp.eq.s32.totalorder %s24, 1
      %p89 = por %p87, %p88
      %p91 = scmp.ne.s32.totalorder %s76, %s90
      %p92 = scmp.eq.s32.totalorder %s24, 0
      %p93 = por %p91, %p92
      %s95 = sadd.s32 %s94, 1
      %p98 = scmp.eq.s32.totalorder %s18, 1
      %p99 = scmp.ne.s32.totalorder %s94, %s96
      %p100 = scmp.eq.s32.totalorder %s18, 0
      %p101 = por %p99, %p100
      %p102 = scmp.ne.s32.totalorder %s94, %s96
      %p103 = scmp.eq.s32.totalorder %s23, 1
      %p104 = por %p102, %p103
      %p105 = scmp.ne.s32.totalorder %s96, %s97
      %p106 = scmp.eq.s32.totalorder %s23, 0
      %p107 = por %p105, %p106
      %p108 = scmp.ne.s32.totalorder %s96, %s97
      %p109 = scmp.eq.s32.totalorder %s24, 1
      %p110 = por %p108, %p109
      %p112 = scmp.ne.s32.totalorder %s97, %s111
      %p113 = scmp.eq.s32.totalorder %s24, 0
      %p114 = por %p112, %p113
      %s116 = sadd.s32 %s115, 1
      %p119 = scmp.eq.s32.totalorder %s18, 1
      %p120 = scmp.ne.s32.totalorder %s115, %s117
      %p121 = scmp.eq.s32.totalorder %s18, 0
      %p122 = por %p120, %p121
      %p123 = scmp.ne.s32.totalorder %s115, %s117
      %p124 = scmp.eq.s32.totalorder %s23, 1
      %p125 = por %p123, %p124
      %p126 = scmp.ne.s32.totalorder %s117, %s118
      %p127 = scmp.eq.s32.totalorder %s23, 0
      %p128 = por %p126, %p127
      %p129 = scmp.ne.s32.totalorder %s117, %s118
      %p130 = scmp.eq.s32.totalorder %s24, 1
      %p131 = por %p129, %p130
      %p133 = scmp.ne.s32.totalorder %s118, %s132
      %p134 = scmp.eq.s32.totalorder %s24, 0
      %p135 = por %p133, %p134
      %s137 = sadd.s32 %s136, 1
      %p140 = scmp.eq.s32.totalorder %s18, 1
      %p141 = scmp.ne.s32.totalorder %s136, %s138
      %p142 = scmp.eq.s32.totalorder %s18, 0
      %p143 = por %p141, %p142
      %p144 = scmp.ne.s32.totalorder %s136, %s138
      %p145 = scmp.eq.s32.totalorder %s23, 1
      %p146 = por %p144, %p145
      %p147 = scmp.ne.s32.totalorder %s138, %s139
      %p148 = scmp.eq.s32.totalorder %s23, 0
      %p149 = por %p147, %p148
      %p150 = scmp.ne.s32.totalorder %s138, %s139
      %p151 = scmp.eq.s32.totalorder %s24, 1
      %p152 = por %p150, %p151
      %p154 = scmp.ne.s32.totalorder %s139, %s153
      %p155 = scmp.eq.s32.totalorder %s24, 0
      %p156 = por %p154, %p155
      %s158 = sadd.s32 %s157, 1
      %p161 = scmp.eq.s32.totalorder %s18, 1
      %p162 = scmp.ne.s32.totalorder %s157, %s159
      %p163 = scmp.eq.s32.totalorder %s18, 0
      %p164 = por %p162, %p163
      %p165 = scmp.ne.s32.totalorder %s157, %s159
      %p166 = scmp.eq.s32.totalorder %s23, 1
      %p167 = por %p165, %p166
      %p168 = scmp.ne.s32.totalorder %s159, %s160
      %p169 = scmp.eq.s32.totalorder %s23, 0
      %p170 = por %p168, %p169
      %p171 = scmp.ne.s32.totalorder %s159, %s160
      %p172 = scmp.eq.s32.totalorder %s24, 1
      %p173 = por %p171, %p172
      %p175 = scmp.ne.s32.totalorder %s160, %s174
      %p176 = scmp.eq.s32.totalorder %s24, 0
      %p177 = por %p175, %p176
      %s178 = ssub.s32 %s18, %s25
      %p179 = scmp.eq.s32.totalorder %s178, 0
      %s181 = sadd.s32 %s180, 1
      %s182 = scalar_select %p179, %s180, %s181
      %p185 = pneg %p179
      %p186 = scmp.eq.s32.totalorder %s18, 1
      %p187 = por %p185, %p186
      %p188 = scmp.ne.s32.totalorder %s180, %s183
      %p189 = scmp.eq.s32.totalorder %s18, 0
      %p190 = por %p188, %p189
      %p191 = scmp.ne.s32.totalorder %s180, %s183
      %p192 = scmp.eq.s32.totalorder %s23, 1
      %p193 = por %p191, %p192
      %p194 = scmp.ne.s32.totalorder %s183, %s184
      %p195 = scmp.eq.s32.totalorder %s23, 0
      %p196 = por %p194, %p195
      %p197 = scmp.ne.s32.totalorder %s183, %s184
      %p198 = scmp.eq.s32.totalorder %s24, 1
      %p199 = por %p197, %p198
      %p201 = scmp.ne.s32.totalorder %s184, %s200
      %p202 = scmp.eq.s32.totalorder %s24, 0
      %p203 = por %p201, %p202
      %p204 = scmp.le.s32.totalorder 1, %s18
      %p205 = scmp.lt.s32.totalorder %s18, 3
      %p206 = pnand %p204, %p205
      %p207 = pneg %p206
      // Predicated region
      $region9: #{tpu_custom_call.1} parent=5 // pred_check
        _
      $region10: #{tpu_custom_call.1} parent=5 // pred_check_branch
        %209 = sbr.rel (%p206) target = $region12
      $region11: #{tpu_custom_call.1} parent=5 // pred_region
        %s210 = ssub.s32 %s18, 1
        // Predicated region
        $region13: #{tpu_custom_call.1} parent=11 // pred_check
          %p211 = pneg %p65
        $region14: #{tpu_custom_call.1} parent=11 // pred_check_branch
          %213 = sbr.rel (%p211) target = $region16
        $region15: #{tpu_custom_call.1} parent=11 // pred_region
          _
        $region16: #{tpu_custom_call.1} parent=11 // pred_fallthru
          _
        // Predicated region
        $region17: #{tpu_custom_call.1} parent=11 // pred_check
          %p214 = pneg %p86
        $region18: #{tpu_custom_call.1} parent=11 // pred_check_branch
          %216 = sbr.rel (%p214) target = $region20
        $region19: #{tpu_custom_call.1} parent=11 // pred_region
          _
        $region20: #{tpu_custom_call.1} parent=11 // pred_fallthru
          _
        // Predicated region
        $region21: #{tpu_custom_call.1} parent=11 // pred_check
          %p217 = pneg %p107
        $region22: #{tpu_custom_call.1} parent=11 // pred_check_branch
          %219 = sbr.rel (%p217) target = $region24
        $region23: #{tpu_custom_call.1} parent=11 // pred_region
          _
        $region24: #{tpu_custom_call.1} parent=11 // pred_fallthru
          _
        // Predicated region
        $region25: #{tpu_custom_call.1} parent=11 // pred_check
          %p220 = pneg %p128
        $region26: #{tpu_custom_call.1} parent=11 // pred_check_branch
          %222 = sbr.rel (%p220) target = $region28
        $region27: #{tpu_custom_call.1} parent=11 // pred_region
          %224 = vsyncadd [#allocation4], 0
          %s225 = sshll.u32 %s4, 4
          %s226 = int_to_ptr.hbm [resolvable:$true] %s225
          %s227 = sshll.u32 [#allocation3], 4
          %s228 = int_to_ptr.vmem [resolvable:$true] %s227
          %233 = dma.hbm_to_vmem [thread:$0]  %s226, 256, %s228, [#allocation4], 128, 128, 8
        $region28: #{tpu_custom_call.1} parent=11 // pred_fallthru
          _
        // Predicated region
        $region29: #{tpu_custom_call.1} parent=11 // pred_check
          %p234 = pneg %p149
        $region30: #{tpu_custom_call.1} parent=11 // pred_check_branch
          %236 = sbr.rel (%p234) target = $region32
        $region31: #{tpu_custom_call.1} parent=11 // pred_region
          %238 = vsyncadd [#allocation7], 0
          %s239 = sshll.u32 %s5, 4
          %s240 = int_to_ptr.hbm [resolvable:$true] %s239
          %s241 = sshll.u32 [#allocation6], 4
          %s242 = int_to_ptr.vmem [resolvable:$true] %s241
          %247 = dma.hbm_to_vmem [thread:$0]  %s240, 1024, %s242, [#allocation7], 128, 128, 8
        $region32: #{tpu_custom_call.1} parent=11 // pred_fallthru
          _
        // Predicated region
        $region33: #{tpu_custom_call.1} parent=11 // pred_check
          %p248 = pneg %p170
        $region34: #{tpu_custom_call.1} parent=11 // pred_check_branch
          %250 = sbr.rel (%p248) target = $region36
        $region35: #{tpu_custom_call.1} parent=11 // pred_region
          _
        $region36: #{tpu_custom_call.1} parent=11 // pred_fallthru
          _
      $region12: #{tpu_custom_call.1} parent=5 // pred_fallthru
        _
      %p251 = scmp.lt.s32.totalorder %s18, 2
      // Predicated region
      $region37: #{tpu_custom_call.1} parent=5 // pred_check
        %p252 = pneg %p251
      $region38: #{tpu_custom_call.1} parent=5 // pred_check_branch
        %254 = sbr.rel (%p252) target = $region40
      $region39: #{tpu_custom_call.1} parent=5 // pred_region
        // Predicated region
        $region41: #{tpu_custom_call.1} parent=39 // pred_check
          %p255 = pneg %p38
        $region42: #{tpu_custom_call.1} parent=39 // pred_check_branch
          %257 = sbr.rel (%p255) target = $region44
        $region43: #{tpu_custom_call.1} parent=39 // pred_region
          %p258 = scmp.lt.s32.totalorder %s18, 1
          %s259 = scalar_select %p258, %s18, 1
          %s260 = smul.addr %s259, 3
          %s261 = smul.addr %s260, 8
          %s262 = scalar_lea.vmem %s0, %s261
        $region44: #{tpu_custom_call.1} parent=39 // pred_fallthru
          _
      $region40: #{tpu_custom_call.1} parent=5 // pred_fallthru
        _
      %p263 = scmp.le.s32.totalorder 1, %s18
      %p264 = scmp.lt.s32.totalorder %s18, 3
      %p265 = pnand %p263, %p264
      %p266 = pneg %p265
      // Predicated region
      $region45: #{tpu_custom_call.1} parent=5 // pred_check
        _
      $region46: #{tpu_custom_call.1} parent=5 // pred_check_branch
        %268 = sbr.rel (%p265) target = $region48
      $region47: #{tpu_custom_call.1} parent=5 // pred_region
        %s269 = ssub.s32 %s18, 1
        // Predicated region
        $region49: #{tpu_custom_call.1} parent=47 // pred_check
          %p270 = pneg %p128
        $region50: #{tpu_custom_call.1} parent=47 // pred_check_branch
          %272 = sbr.rel (%p270) target = $region52
        $region51: #{tpu_custom_call.1} parent=47 // pred_region
          %274 = dma.done [#allocation4], 256
        $region52: #{tpu_custom_call.1} parent=47 // pred_fallthru
          _
        // Predicated region
        $region53: #{tpu_custom_call.1} parent=47 // pred_check
          %p275 = pneg %p149
        $region54: #{tpu_custom_call.1} parent=47 // pred_check_branch
          %277 = sbr.rel (%p275) target = $region56
        $region55: #{tpu_custom_call.1} parent=47 // pred_region
          %279 = dma.done [#allocation7], 1024
        $region56: #{tpu_custom_call.1} parent=47 // pred_fallthru
          _
        %p280 = scmp.lt.s32.totalorder %s23, 1
        %s281 = scalar_select %p280, %s23, 1
        %s282 = smul.addr %s281, 3
        %s283 = smul.addr %s282, 8
        %s284 = scalar_lea.vmem %s0, %s283
        %p285 = pneg %p44
        %p286 = pneg %p41
        %p287 = pneg %p65
        %p288 = pneg %p62
        %p289 = pneg %p86
        %p290 = pneg %p83
        %p291 = pneg %p107
        %p292 = pneg %p104
        %p293 = pneg %p128
        %p294 = pneg %p125
        %p295 = pneg %p149
        %p296 = pneg %p146
        %p297 = pneg %p170
        %p298 = pneg %p167
        %p299 = pneg %p196
        %p300 = pneg %p193
        %s301 = sand.u32 %s183, 1
        %s302 = scalar_lea.sflag [#allocation5], %s301
        %s303 = sand.u32 %s183, 1
        %s304 = smul.addr %s303, 16
        %s305 = scalar_lea.vmem [#allocation8], %s304
        %p306 = scmp.lt.s32.totalorder %s23, 1
        %s307 = scalar_select %p306, %s23, 1
        %s308 = smul.addr %s307, 3
        %s309 = smul.addr %s308, 8
        %s310 = scalar_lea.vmem %s0, %s309
        %vm311 = vcmask 588800
        %312 = vst.msk [vmem:[#allocation2] sm:$0xff] %vm311, 0.0
        %313 = vst.msk [vmem:[#allocation2 + $0x8] sm:$0xff] %vm311, 0.0
        %vm314 = vcmask 582656
        %315 = vst.msk [vmem:[#allocation2 + $0x10] sm:$0x3] %vm314, 0.0
        %v316 = vld [vmem:[%s1] sm:$0xff]
        %v317 = vld [vmem:[%s1 + $0x8] sm:$0x1]
        %v318 = vld [vmem:[#allocation3] sm:$0xff]
        %v319 = vld [vmem:[#allocation3 + $0x8] sm:$0x1]
        %v320 = vld [vmem:[%s3] sm:$0x1]
        %v321 = vld [vmem:[%s6] sm:$0x1]
        %v322 = vld [vmem:[%s310] sm:$0xff]
        %v323 = vld [vmem:[%s310 + $0x8] sm:$0xff]
        %v324 = vmax.f32 %v322, 0.0
        %v325 = vmax.f32 %v323, 0.0
        %v326 = vperm.slane %v316, 0
        %v327 = vmul.f32 %v324, %v326
        %v328 = vmul.f32 %v325, %v326
        %v329 = vadd.f32 %v327, 0.0
        %v330 = vadd.f32 %v328, 0.0
        %v331 = vperm.slane %v316, 1
        %333 = vrot.lane.b32.xlu0 %v331, 4
        %v334 = vpop.permute.xlu0 %333
        %v336 = vmul.f32 %v324, %v334
        %v337 = vmul.f32 %v325, %v334
        %340 = vrot.lane.b32.xlu0 %v336, 124
        %v341 = vpop.permute.xlu0 %340
        %342 = vrot.lane.b32.xlu0 %v337, 124
        %v343 = vpop.permute.xlu0 %342
        %v346 = vadd.f32 %v329, %v341
        %v347 = vadd.f32 %v330, %v343
        %v348 = vperm.slane %v316, 2
        %350 = vrot.lane.b32.xlu0 %v348, 8
        %v351 = vpop.permute.xlu0 %350
        %v353 = vmul.f32 %v324, %v351
        %v354 = vmul.f32 %v325, %v351
        %357 = vrot.lane.b32.xlu0 %v353, 120
        %v358 = vpop.permute.xlu0 %357
        %359 = vrot.lane.b32.xlu0 %v354, 120
        %v360 = vpop.permute.xlu0 %359
        %v363 = vadd.f32 %v346, %v358
        %v364 = vadd.f32 %v347, %v360
        %v365 = vld [vmem:[%s310 + $0x1] sm:$0xff]
        %v366 = vld [vmem:[%s310 + $0x9] sm:$0xff]
        %v367 = vmax.f32 %v365, 0.0
        %v368 = vmax.f32 %v366, 0.0
        %v369 = vperm.slane %v316, 3
        %v370 = vmul.f32 %v367, %v369
        %v371 = vmul.f32 %v368, %v369
        %v372 = vadd.f32 %v363, %v370
        %v373 = vadd.f32 %v364, %v371
        %v374 = vperm.slane %v316, 4
        %376 = vrot.lane.b32.xlu0 %v374, 4
        %v377 = vpop.permute.xlu0 %376
        %v379 = vmul.f32 %v367, %v377
        %v380 = vmul.f32 %v368, %v377
        %383 = vrot.lane.b32.xlu0 %v379, 124
        %v384 = vpop.permute.xlu0 %383
        %385 = vrot.lane.b32.xlu0 %v380, 124
        %v386 = vpop.permute.xlu0 %385
        %v389 = vadd.f32 %v372, %v384
        %v390 = vadd.f32 %v373, %v386
        %v391 = vperm.slane %v316, 5
        %393 = vrot.lane.b32.xlu0 %v391, 8
        %v394 = vpop.permute.xlu0 %393
        %v396 = vmul.f32 %v367, %v394
        %v397 = vmul.f32 %v368, %v394
        %400 = vrot.lane.b32.xlu0 %v396, 120
        %v401 = vpop.permute.xlu0 %400
        %402 = vrot.lane.b32.xlu0 %v397, 120
        %v403 = vpop.permute.xlu0 %402
        %v406 = vadd.f32 %v389, %v401
        %v407 = vadd.f32 %v390, %v403
        %v408 = vld [vmem:[%s310 + $0x2] sm:$0xff]
        %v409 = vld [vmem:[%s310 + $0xa] sm:$0xff]
        %v410 = vmax.f32 %v408, 0.0
        %v411 = vmax.f32 %v409, 0.0
        %v412 = vperm.slane %v316, 6
        %v413 = vmul.f32 %v410, %v412
        %v414 = vmul.f32 %v411, %v412
        %v415 = vadd.f32 %v406, %v413
        %v416 = vadd.f32 %v407, %v414
        %v417 = vperm.slane %v316, 7
        %419 = vrot.lane.b32.xlu0 %v417, 4
        %v420 = vpop.permute.xlu0 %419
        %v422 = vmul.f32 %v410, %v420
        %v423 = vmul.f32 %v411, %v420
        %426 = vrot.lane.b32.xlu0 %v422, 124
        %v427 = vpop.permute.xlu0 %426
        %428 = vrot.lane.b32.xlu0 %v423, 124
        %v429 = vpop.permute.xlu0 %428
        %v432 = vadd.f32 %v415, %v427
        %v433 = vadd.f32 %v416, %v429
        %v434 = vperm.slane %v317, 0
        %436 = vrot.lane.b32.xlu0 %v434, 8
        %v437 = vpop.permute.xlu0 %436
        %v439 = vmul.f32 %v410, %v437
        %v440 = vmul.f32 %v411, %v437
        %443 = vrot.lane.b32.xlu0 %v439, 120
        %v444 = vpop.permute.xlu0 %443
        %445 = vrot.lane.b32.xlu0 %v440, 120
        %v446 = vpop.permute.xlu0 %445
        %v449 = vadd.f32 %v432, %v444
        %v450 = vadd.f32 %v433, %v446
        %v451 = vld [vmem:[%s2] sm:$0xff]
        %v452 = vld [vmem:[%s2 + $0x8] sm:$0xff]
        %v453 = vld [vmem:[%s2 + $0x10] sm:$0xff]
        %v454 = vld [vmem:[%s2 + $0x18] sm:$0xff]
        %v455 = vld [vmem:[%s2 + $0x20] sm:$0xff]
        %v456 = vld [vmem:[%s2 + $0x28] sm:$0xff]
        %v457 = vld [vmem:[%s2 + $0x30] sm:$0xff]
        %v458 = vld [vmem:[%s2 + $0x38] sm:$0xff]
        %v460 = vperm.slane %v320, 0
        %vm462 = vcmask 523264
        %v464 = vsel %vm462, %v449, 0
        %v467 = vsel %vm462, %v450, 0
        %469 = vmatpush.msra.mxu0 0.0
        %470 = vmatpush.msra.mxu0 0.0
        %471 = vmatpush.msra.mxu0 0.0
        %472 = vmatpush.msra.mxu0 0.0
        %473 = vmatpush.msra.mxu0 0.0
        %474 = vmatpush.msra.mxu0 0.0
        %475 = vmatpush.msra.mxu0 0.0
        %476 = vmatpush.msra.mxu0 0.0
        %477 = vmatpush.msra.mxu0 %v458
        %478 = vmatpush.msra.mxu0 %v457
        %479 = vmatpush.msra.mxu0 %v456
        %480 = vmatpush.msra.mxu0 %v455
        %481 = vmatpush.msra.mxu0 %v454
        %482 = vmatpush.msra.mxu0 %v453
        %483 = vmatpush.msra.mxu0 %v452
        %484 = vmatpush.msra.mxu0 %v451
        %485 = vmatmul.f32.gmra.mxu0 %v464
        %v486 = vpop.f32.mrf.mxu0
        %v487 = vadd.f32 %v460, %v486
        %488 = vmatmul.f32.gmra.mxu0 %v467
        %v489 = vpop.f32.mrf.mxu0
        %v490 = vadd.f32 %v460, %v489
        %491 = vdwg.mxu0
        %494 = vrot.lane.b32.xlu0 %v487, 4
        %v495 = vpop.permute.xlu0 %494
        %496 = vrot.lane.b32.xlu0 %v490, 4
        %v497 = vpop.permute.xlu0 %496
        %vm500 = vcmask 556064
        %501 = vst.msk [vmem:[#allocation2 + $0x1] sm:$0xff] %vm500, %v495
        %502 = vst.msk [vmem:[#allocation2 + $0x9] sm:$0xff] %vm500, %v497
        %v503 = vld [vmem:[#allocation2] sm:$0xff]
        %v504 = vld [vmem:[#allocation2 + $0x8] sm:$0xff]
        %v505 = vmax.f32 %v503, 0.0
        %v506 = vmax.f32 %v504, 0.0
        %v507 = vperm.slane %v318, 0
        %v508 = vmul.f32 %v505, %v507
        %v509 = vmul.f32 %v506, %v507
        %v510 = vadd.f32 %v508, 0.0
        %v511 = vadd.f32 %v509, 0.0
        %v512 = vperm.slane %v318, 1
        %514 = vrot.lane.b32.xlu0 %v512, 4
        %v515 = vpop.permute.xlu0 %514
        %v517 = vmul.f32 %v505, %v515
        %v518 = vmul.f32 %v506, %v515
        %521 = vrot.lane.b32.xlu0 %v517, 124
        %v522 = vpop.permute.xlu0 %521
        %523 = vrot.lane.b32.xlu0 %v518, 124
        %v524 = vpop.permute.xlu0 %523
        %v527 = vadd.f32 %v510, %v522
        %v528 = vadd.f32 %v511, %v524
        %v529 = vperm.slane %v318, 2
        %531 = vrot.lane.b32.xlu0 %v529, 8
        %v532 = vpop.permute.xlu0 %531
        %v534 = vmul.f32 %v505, %v532
        %v535 = vmul.f32 %v506, %v532
        %538 = vrot.lane.b32.xlu0 %v534, 120
        %v539 = vpop.permute.xlu0 %538
        %540 = vrot.lane.b32.xlu0 %v535, 120
        %v541 = vpop.permute.xlu0 %540
        %v544 = vadd.f32 %v527, %v539
        %v545 = vadd.f32 %v528, %v541
        %v546 = vld [vmem:[#allocation2 + $0x1] sm:$0xff]
        %v547 = vld [vmem:[#allocation2 + $0x9] sm:$0xff]
        %v548 = vmax.f32 %v546, 0.0
        %v549 = vmax.f32 %v547, 0.0
        %v550 = vperm.slane %v318, 3
        %v551 = vmul.f32 %v548, %v550
        %v552 = vmul.f32 %v549, %v550
        %v553 = vadd.f32 %v544, %v551
        %v554 = vadd.f32 %v545, %v552
        %v555 = vperm.slane %v318, 4
        %557 = vrot.lane.b32.xlu0 %v555, 4
        %v558 = vpop.permute.xlu0 %557
        %v560 = vmul.f32 %v548, %v558
        %v561 = vmul.f32 %v549, %v558
        %564 = vrot.lane.b32.xlu0 %v560, 124
        %v565 = vpop.permute.xlu0 %564
        %566 = vrot.lane.b32.xlu0 %v561, 124
        %v567 = vpop.permute.xlu0 %566
        %v570 = vadd.f32 %v553, %v565
        %v571 = vadd.f32 %v554, %v567
        %v572 = vperm.slane %v318, 5
        %574 = vrot.lane.b32.xlu0 %v572, 8
        %v575 = vpop.permute.xlu0 %574
        %v577 = vmul.f32 %v548, %v575
        %v578 = vmul.f32 %v549, %v575
        %581 = vrot.lane.b32.xlu0 %v577, 120
        %v582 = vpop.permute.xlu0 %581
        %583 = vrot.lane.b32.xlu0 %v578, 120
        %v584 = vpop.permute.xlu0 %583
        %v587 = vadd.f32 %v570, %v582
        %v588 = vadd.f32 %v571, %v584
        %v589 = vld [vmem:[#allocation2 + $0x2] sm:$0xff]
        %v590 = vld [vmem:[#allocation2 + $0xa] sm:$0xff]
        %v591 = vmax.f32 %v589, 0.0
        %v592 = vmax.f32 %v590, 0.0
        %v593 = vperm.slane %v318, 6
        %v594 = vmul.f32 %v591, %v593
        %v595 = vmul.f32 %v592, %v593
        %v596 = vadd.f32 %v587, %v594
        %v597 = vadd.f32 %v588, %v595
        %v598 = vperm.slane %v318, 7
        %600 = vrot.lane.b32.xlu0 %v598, 4
        %v601 = vpop.permute.xlu0 %600
        %v603 = vmul.f32 %v591, %v601
        %v604 = vmul.f32 %v592, %v601
        %607 = vrot.lane.b32.xlu0 %v603, 124
        %v608 = vpop.permute.xlu0 %607
        %609 = vrot.lane.b32.xlu0 %v604, 124
        %v610 = vpop.permute.xlu0 %609
        %v613 = vadd.f32 %v596, %v608
        %v614 = vadd.f32 %v597, %v610
        %v615 = vperm.slane %v319, 0
        %617 = vrot.lane.b32.xlu0 %v615, 8
        %v618 = vpop.permute.xlu0 %617
        %v620 = vmul.f32 %v591, %v618
        %v621 = vmul.f32 %v592, %v618
        %624 = vrot.lane.b32.xlu0 %v620, 120
        %v625 = vpop.permute.xlu0 %624
        %626 = vrot.lane.b32.xlu0 %v621, 120
        %v627 = vpop.permute.xlu0 %626
        %v630 = vadd.f32 %v613, %v625
        %v631 = vadd.f32 %v614, %v627
        %v632 = vld [vmem:[#allocation6] sm:$0xff]
        %v633 = vld [vmem:[#allocation6 + $0x8] sm:$0xff]
        %v634 = vld [vmem:[#allocation6 + $0x10] sm:$0xff]
        %v635 = vld [vmem:[#allocation6 + $0x18] sm:$0xff]
        %v636 = vld [vmem:[#allocation6 + $0x20] sm:$0xff]
        %v637 = vld [vmem:[#allocation6 + $0x28] sm:$0xff]
        %v638 = vld [vmem:[#allocation6 + $0x30] sm:$0xff]
        %v639 = vld [vmem:[#allocation6 + $0x38] sm:$0xff]
        %v641 = vperm.slane %v321, 0
        %v644 = vsel %vm462, %v630, 0
        %v647 = vsel %vm462, %v631, 0
        %649 = vmatpush.msra.mxu0 0.0
        %650 = vmatpush.msra.mxu0 0.0
        %651 = vmatpush.msra.mxu0 0.0
        %652 = vmatpush.msra.mxu0 0.0
        %653 = vmatpush.msra.mxu0 0.0
        %654 = vmatpush.msra.mxu0 0.0
        %655 = vmatpush.msra.mxu0 0.0
        %656 = vmatpush.msra.mxu0 0.0
        %657 = vmatpush.msra.mxu0 %v639
        %658 = vmatpush.msra.mxu0 %v638
        %659 = vmatpush.msra.mxu0 %v637
        %660 = vmatpush.msra.mxu0 %v636
        %661 = vmatpush.msra.mxu0 %v635
        %662 = vmatpush.msra.mxu0 %v634
        %663 = vmatpush.msra.mxu0 %v633
        %664 = vmatpush.msra.mxu0 %v632
        %665 = vmatmul.f32.gmra.mxu0 %v644
        %v666 = vpop.f32.mrf.mxu0
        %v667 = vadd.f32 %v641, %v666
        %668 = vmatmul.f32.gmra.mxu0 %v647
        %v669 = vpop.f32.mrf.mxu0
        %v670 = vadd.f32 %v641, %v669
        %671 = vdwg.mxu0
        %672 = vst [vmem:[%s305] sm:$0xff] %v667
        %673 = vst [vmem:[%s305 + $0x8] sm:$0xff] %v670
        %s674 = sand.u32 %s183, 1
        %s675 = scalar_lea.sflag [#allocation5], %s674
        %s676 = sand.u32 %s183, 1
        %s677 = smul.addr %s676, 16
        %s678 = scalar_lea.vmem [#allocation8], %s677
        // Predicated region
        $region57: #{tpu_custom_call.1} parent=47 // pred_check
          %p679 = pneg %p193
        $region58: #{tpu_custom_call.1} parent=47 // pred_check_branch
          %681 = sbr.rel (%p679) target = $region60
        $region59: #{tpu_custom_call.1} parent=47 // pred_region
          %683 = vsyncadd %s675, 0
          %s684 = smul.addr %s23, 2
          %s685 = smul.addr %s684, 8
          %s686 = scalar_lea.hbm %s7, %s685
          %s687 = sshll.u32 %s678, 4
          %s688 = int_to_ptr.vmem [resolvable:$true] %s687
          %s689 = sshll.u32 %s686, 4
          %s690 = int_to_ptr.hbm [resolvable:$true] %s689
          %695 = dma.vmem_to_hbm [thread:$0]  %s688, 256, %s690, %s675, 128, 128, 8
        $region60: #{tpu_custom_call.1} parent=47 // pred_fallthru
          _
      $region48: #{tpu_custom_call.1} parent=5 // pred_fallthru
        _
      %p696 = scmp.le.s32.totalorder 2, %s18
      // Predicated region
      $region61: #{tpu_custom_call.1} parent=5 // pred_check
        %p697 = pneg %p696
      $region62: #{tpu_custom_call.1} parent=5 // pred_check_branch
        %699 = sbr.rel (%p697) target = $region64
      $region63: #{tpu_custom_call.1} parent=5 // pred_region
        %s700 = ssub.s32 %s18, 2
        // Predicated region
        $region65: #{tpu_custom_call.1} parent=63 // pred_check
          %p701 = pneg %p199
        $region66: #{tpu_custom_call.1} parent=63 // pred_check_branch
          %703 = sbr.rel (%p701) target = $region68
        $region67: #{tpu_custom_call.1} parent=63 // pred_region
          %s704 = sand.u32 %s184, 1
          %s705 = scalar_lea.sflag [#allocation5], %s704
          %s706 = sand.u32 %s184, 1
          %s707 = smul.addr %s706, 16
          %s708 = scalar_lea.vmem [#allocation8], %s707
          %710 = dma.done %s705, 256
        $region68: #{tpu_custom_call.1} parent=63 // pred_fallthru
          _
      $region64: #{tpu_custom_call.1} parent=5 // pred_fallthru
        _
    $region6: #{tpu_custom_call.1} parent=1 // loop_footer
      %s22 = sadd.s32 1, %s18
    $region7: #{tpu_custom_call.1} parent=1 // loop_footer_branch
      %17 = sbr.rel target = $region3
    $region8: #{tpu_custom_call.1} parent=1 // loop_exit
      _
    %711 = vsyncpa [#allocation4], 1
    %s712 = scalar_lea.sflag [#allocation4], 1
    %713 = vsyncpa %s712, 1
    %714 = vsyncpa [#allocation7], 1
    %715 = vsyncpa [#allocation5], 1
    %s716 = scalar_lea.sflag [#allocation5], 1
    %717 = vsyncpa %s716, 1

</llo_original>
